<compile_context>
chip_gen: v7x
topology: tpu7x:2x2x1
jax: 0.10.0
libtpu: 0.0.40
codegen_flags: <defaults>
</compile_context>

<pallas_src>
import functools

import jax
import jax.numpy as jnp
from jax.experimental import pallas as pl
from jax.experimental.pallas import tpu as pltpu


def _distill_kernel(student_ref, teacher_ref, labels_ref, out_ref, acc_ref, *,
                    alpha, T, B_total, block_B, blocks_per_split, apply_mask):
    i = pl.program_id(0)      # split across TensorCores ('parallel')
    j = pl.program_id(1)      # batch block within the split ('arbitrary')

    @pl.when(j == 0)
    def _init():
        acc_ref[...] = jnp.zeros_like(acc_ref)

    s = student_ref[...].astype(jnp.float32)                 # (block_B, C)
    bB, C = s.shape
    need_hard = alpha != 0.0
    need_soft = alpha != 1.0

    # Student row-softmax pieces, shared by the hard and soft paths.
    s_max = jnp.max(s, axis=1, keepdims=True)
    s_shift = s - s_max
    lse_s = None
    if need_hard or (need_soft and T == 1.0):
        lse_s = jnp.log(jnp.sum(jnp.exp(s_shift), axis=1, keepdims=True))

    contribs = []

    if need_hard:
        # -log softmax(student)[label] per row, without materializing log_probs.
        lbl = labels_ref[...]                                # (block_B, 1) int32
        one_hot = jax.lax.broadcasted_iota(jnp.int32, (bB, C), 1) == lbl
        picked = jnp.sum(jnp.where(one_hot, s_shift, 0.0), axis=1, keepdims=True)
        contribs.append(alpha * (lse_s - picked))

    if need_soft:
        t = teacher_ref[...].astype(jnp.float32)             # (block_B, C)
        if T == 1.0:
            sT_shift, lse_sT, tT = s_shift, lse_s, t         # reuse hard-path work
        else:
            inv_T = 1.0 / T
            sT_shift = s_shift * inv_T                       # max(s/T) == max(s)/T
            lse_sT = jnp.log(jnp.sum(jnp.exp(sT_shift), axis=1, keepdims=True))
            tT = t * inv_T
        tT_max = jnp.max(tT, axis=1, keepdims=True)
        tT_shift = tT - tT_max
        e_t = jnp.exp(tT_shift)                              # single exp pass
        denom_t = jnp.sum(e_t, axis=1, keepdims=True)
        num = jnp.sum(e_t * (tT_shift - sT_shift), axis=1, keepdims=True)
        # per-row  sum_c p_t * (log p_t - log p_s), with sum_c p_t == 1 folded in
        # (approx=False keeps the 1e-5 tolerance).
        kl_row = (num * pl.reciprocal(denom_t, approx=False)
                  - jnp.log(denom_t) + lse_sT)
        contribs.append(((1.0 - alpha) * T * T) * kl_row)

    per_row = contribs[0]
    for c in contribs[1:]:
        per_row = per_row + c

    if apply_mask:   # zero out batch-padding rows
        row = ((i * blocks_per_split + j) * block_B
               + jax.lax.broadcasted_iota(jnp.int32, (bB, 1), 0))
        per_row = jnp.where(row < B_total, per_row, 0.0)

    acc_ref[...] += per_row

    @pl.when(j == pl.num_programs(1) - 1)
    def _finalize():
        out_ref[...] = jnp.full(out_ref.shape, jnp.sum(acc_ref[...]),
                                dtype=jnp.float32)


def distillation_loss(student_outputs, teacher_outputs, labels,
                      alpha=0.0, temperature=1.0, block_rows=None):
    """Pallas TPU implementation of DistillationLoss.forward."""
    B, C = student_outputs.shape
    alpha = float(alpha)
    T = float(temperature)
    labels_2d = jnp.asarray(labels).reshape(B, 1).astype(jnp.int32)

    # Batch tile: big tiles amortize the ~0.35us/step overhead, but the working
    # set (2 logits inputs x 2 pipeline buffers + a handful of (block_B, C) f32
    # temporaries, ~10 tiles total) must fit v7x's 32 MiB scoped VMEM.
    if block_rows is None:
        block_rows = min(512, max(8, (28 * 1024 * 1024) // (40 * C) // 8 * 8))
    block_B = max(8, (int(block_rows) + 7) // 8 * 8)
    block_B = min(block_B, (B + 7) // 8 * 8)      # don't over-pad tiny batches

    n_blocks = pl.cdiv(B, block_B)
    n_splits = 2 if n_blocks >= 2 else 1          # feed both TCs on v7x megacore
    blocks_per_split = pl.cdiv(n_blocks, n_splits)
    B_pad = n_splits * blocks_per_split * block_B

    if B_pad != B:
        pad = B_pad - B
        student_outputs = jnp.pad(student_outputs, ((0, pad), (0, 0)))
        teacher_outputs = jnp.pad(teacher_outputs, ((0, pad), (0, 0)))
        labels_2d = jnp.pad(labels_2d, ((0, pad), (0, 0)))

    kernel = functools.partial(
        _distill_kernel, alpha=alpha, T=T, B_total=B, block_B=block_B,
        blocks_per_split=blocks_per_split, apply_mask=(B_pad != B))

    logits_spec = pl.BlockSpec((block_B, C),
                               lambda i, j: (i * blocks_per_split + j, 0))
    labels_spec = pl.BlockSpec((block_B, 1),
                               lambda i, j: (i * blocks_per_split + j, 0))

    out = pl.pallas_call(
        kernel,
        out_shape=jax.ShapeDtypeStruct((n_splits * 8, 128), jnp.float32),
        grid_spec=pltpu.PrefetchScalarGridSpec(
            num_scalar_prefetch=0,
            grid=(n_splits, blocks_per_split),
            in_specs=[logits_spec, logits_spec, labels_spec],
            out_specs=pl.BlockSpec((8, 128), lambda i, j: (i, 0)),
            scratch_shapes=[pltpu.VMEM((block_B, 1), jnp.float32)],
        ),
        compiler_params=pltpu.CompilerParams(
            dimension_semantics=("parallel", "arbitrary"),
            vmem_limit_bytes=32 * 1024 * 1024),
    )(student_outputs, teacher_outputs, labels_2d)

    # Per-split partial sums sit in lane 0 of rows 0, 8, 16, ...
    partials = out[0::8, 0]
    return jnp.sum(partials) / B


def _reference(student, teacher, labels, alpha, T):
    """Pure-JAX reference matching the PyTorch semantics."""
    log_probs = jax.nn.log_softmax(student, axis=1)
    hard = -jnp.mean(jnp.take_along_axis(log_probs, labels[:, None], axis=1))
    log_p_s = jax.nn.log_softmax(student / T, axis=1)
    p_t = jax.nn.softmax(teacher / T, axis=1)
    kl = jnp.sum(p_t * (jnp.log(p_t) - log_p_s)) / student.shape[0]
    soft = kl * (T * T)
    return alpha * hard + (1 - alpha) * soft


if __name__ == "__main__":
    root = jax.random.PRNGKey(0)

    # (B, C, alpha, T, block_rows)
    tests = [
        (8, 32, 0.3, 2.0, None),    # both paths, single tile
        (10, 32, 0.5, 1.0, None),   # T==1 reuse + batch padding / masking
        (8, 32, 1.0, 3.0, None),    # hard-only static specialization
        (40, 32, 0.25, 4.0, 8),     # multi-block grid + 2-way split + mask
    ]

    for B, C, alpha, T, br in tests:
        ks, kt, kl_ = jax.random.split(jax.random.fold_in(root, B * 1000 + C), 3)
        student = jax.random.normal(ks, (B, C), dtype=jnp.float32)
        teacher = jax.random.normal(kt, (B, C), dtype=jnp.float32)
        labels = jax.random.randint(kl_, (B,), 0, C, dtype=jnp.int32)

        loss = distillation_loss(student, teacher, labels,
                                 alpha=alpha, temperature=T, block_rows=br)
        loss = jax.block_until_ready(loss)
        ref = _reference(student, teacher, labels, alpha, T)
        assert jnp.allclose(loss, ref, rtol=1e-5, atol=1e-5), \
            (B, C, alpha, T, float(loss), float(ref))

    print("KERNEL_OK")
</pallas_src>

<mosaic_0001>
module attributes {stable_mosaic.version = 11 : i64} {
  func.func @_distill_kernel(%arg0: i32, %arg1: i32, %arg2: memref<8x32xf32, #tpu.memory_space<vmem>>, %arg3: memref<8x32xf32, #tpu.memory_space<vmem>>, %arg4: memref<8x1xi32, #tpu.memory_space<vmem>>, %arg5: memref<8x128xf32, #tpu.memory_space<vmem>>, %arg6: memref<8x1xf32, #tpu.memory_space<vmem>>) attributes {dimension_semantics = [#tpu.dimension_semantics<parallel>, #tpu.dimension_semantics<arbitrary>], iteration_bounds = array<i64: 1, 1>, scalar_prefetch = 0 : i64, scratch_operands = 1 : i64, tpu.core_type = #tpu.core_type<tc>, window_params = [{transform_indices = @transform_0, window_bounds = array<i64: 8, 32>}, {transform_indices = @transform_1, window_bounds = array<i64: 8, 32>}, {transform_indices = @transform_2, window_bounds = array<i64: 8, 1>}, {transform_indices = @transform_3, window_bounds = array<i64: 8, 128>}]} {
    %c0_i32 = arith.constant 0 : i32
    %0 = arith.cmpi eq, %arg1, %c0_i32 : i32
    %1 = arith.extui %0 : i1 to i32
    %c0_i32_0 = arith.constant 0 : i32
    %2 = arith.cmpi ne, %1, %c0_i32_0 : i32
    scf.if %2 {
      %cst_23 = arith.constant 0.000000e+00 : f32
      %57 = vector.broadcast %cst_23 : f32 to vector<8x1xf32>
      %c0_24 = arith.constant 0 : index
      %c0_25 = arith.constant 0 : index
      %58 = vector.load %arg6[%c0_24, %c0_25] : memref<8x1xf32, #tpu.memory_space<vmem>>, vector<8x1xf32>
      tpu.vector_store %arg6[%c0_24, %c0_25], %57 {strides = array<i32>} : memref<8x1xf32, #tpu.memory_space<vmem>>, vector<8x1xf32>,
    } else {
    }
    %c0 = arith.constant 0 : index
    %c0_1 = arith.constant 0 : index
    %3 = vector.load %arg2[%c0, %c0_1] : memref<8x32xf32, #tpu.memory_space<vmem>>, vector<8x32xf32>
    %cst = arith.constant dense<0xFF800000> : vector<8xf32>
    %4 = vector.multi_reduction <maximumf>, %3, %cst [1] : vector<8x32xf32> to vector<8xf32>
    %5 = vector.shape_cast %4 : vector<8xf32> to vector<8x1xf32>
    %6 = vector.broadcast %5 : vector<8x1xf32> to vector<8x32xf32>
    %7 = arith.subf %3, %6 : vector<8x32xf32>
    %8 = math.exp %7 : vector<8x32xf32>
    %cst_2 = arith.constant dense<0.000000e+00> : vector<8xf32>
    %9 = vector.multi_reduction <add>, %8, %cst_2 [1] : vector<8x32xf32> to vector<8xf32>
    %10 = vector.shape_cast %9 : vector<8xf32> to vector<8x1xf32>
    %11 = math.log %10 : vector<8x1xf32>
    %c0_3 = arith.constant 0 : index
    %c0_4 = arith.constant 0 : index
    %12 = vector.load %arg4[%c0_3, %c0_4] : memref<8x1xi32, #tpu.memory_space<vmem>>, vector<8x1xi32>
    %13 = tpu.iota {dimensions = array<i32: 1>} : vector<8x32xi32>
    %14 = vector.broadcast %12 : vector<8x1xi32> to vector<8x32xi32>
    %15 = arith.cmpi eq, %13, %14 : vector<8x32xi32>
    %cst_5 = arith.constant 0.000000e+00 : f32
    %16 = vector.broadcast %cst_5 : f32 to vector<8x32xf32>
    %17 = arith.select %15, %7, %16 : vector<8x32xi1>, vector<8x32xf32>
    %cst_6 = arith.constant dense<0.000000e+00> : vector<8xf32>
    %18 = vector.multi_reduction <add>, %17, %cst_6 [1] : vector<8x32xf32> to vector<8xf32>
    %19 = vector.shape_cast %18 : vector<8xf32> to vector<8x1xf32>
    %20 = arith.subf %11, %19 : vector<8x1xf32>
    %cst_7 = arith.constant 3.000000e-01 : f32
    %21 = vector.broadcast %cst_7 : f32 to vector<8x1xf32>
    %22 = arith.mulf %21, %20 : vector<8x1xf32>
    %c0_8 = arith.constant 0 : index
    %c0_9 = arith.constant 0 : index
    %23 = vector.load %arg3[%c0_8, %c0_9] : memref<8x32xf32, #tpu.memory_space<vmem>>, vector<8x32xf32>
    %cst_10 = arith.constant 5.000000e-01 : f32
    %24 = vector.broadcast %cst_10 : f32 to vector<8x32xf32>
    %25 = arith.mulf %7, %24 : vector<8x32xf32>
    %26 = math.exp %25 : vector<8x32xf32>
    %cst_11 = arith.constant dense<0.000000e+00> : vector<8xf32>
    %27 = vector.multi_reduction <add>, %26, %cst_11 [1] : vector<8x32xf32> to vector<8xf32>
    %28 = vector.shape_cast %27 : vector<8xf32> to vector<8x1xf32>
    %29 = math.log %28 : vector<8x1xf32>
    %cst_12 = arith.constant 5.000000e-01 : f32
    %30 = vector.broadcast %cst_12 : f32 to vector<8x32xf32>
    %31 = arith.mulf %23, %30 : vector<8x32xf32>
    %cst_13 = arith.constant dense<0xFF800000> : vector<8xf32>
    %32 = vector.multi_reduction <maximumf>, %31, %cst_13 [1] : vector<8x32xf32> to vector<8xf32>
    %33 = vector.shape_cast %32 : vector<8xf32> to vector<8x1xf32>
    %34 = vector.broadcast %33 : vector<8x1xf32> to vector<8x32xf32>
    %35 = arith.subf %31, %34 : vector<8x32xf32>
    %36 = math.exp %35 : vector<8x32xf32>
    %cst_14 = arith.constant dense<0.000000e+00> : vector<8xf32>
    %37 = vector.multi_reduction <add>, %36, %cst_14 [1] : vector<8x32xf32> to vector<8xf32>
    %38 = vector.shape_cast %37 : vector<8xf32> to vector<8x1xf32>
    %39 = arith.subf %35, %25 : vector<8x32xf32>
    %40 = arith.mulf %36, %39 : vector<8x32xf32>
    %cst_15 = arith.constant dense<0.000000e+00> : vector<8xf32>
    %41 = vector.multi_reduction <add>, %40, %cst_15 [1] : vector<8x32xf32> to vector<8xf32>
    %42 = vector.shape_cast %41 : vector<8xf32> to vector<8x1xf32>
    %43 = tpu.reciprocal %38 : vector<8x1xf32> -> vector<8x1xf32>
    %44 = arith.mulf %42, %43 : vector<8x1xf32>
    %45 = math.log %38 : vector<8x1xf32>
    %46 = arith.subf %44, %45 : vector<8x1xf32>
    %47 = arith.addf %46, %29 : vector<8x1xf32>
    %cst_16 = arith.constant 2.800000e+00 : f32
    %48 = vector.broadcast %cst_16 : f32 to vector<8x1xf32>
    %49 = arith.mulf %48, %47 : vector<8x1xf32>
    %50 = arith.addf %22, %49 : vector<8x1xf32>
    %c0_17 = arith.constant 0 : index
    %c0_18 = arith.constant 0 : index
    %51 = vector.load %arg6[%c0_17, %c0_18] : memref<8x1xf32, #tpu.memory_space<vmem>>, vector<8x1xf32>
    %52 = arith.addf %51, %50 : vector<8x1xf32>
    %c0_19 = arith.constant 0 : index
    %c0_20 = arith.constant 0 : index
    %53 = vector.load %arg6[%c0_19, %c0_20] : memref<8x1xf32, #tpu.memory_space<vmem>>, vector<8x1xf32>
    tpu.vector_store %arg6[%c0_19, %c0_20], %52 {strides = array<i32>} : memref<8x1xf32, #tpu.memory_space<vmem>>, vector<8x1xf32>,
    %c0_i32_21 = arith.constant 0 : i32
    %54 = arith.cmpi eq, %arg1, %c0_i32_21 : i32
    %55 = arith.extui %54 : i1 to i32
    %c0_i32_22 = arith.constant 0 : i32
    %56 = arith.cmpi ne, %55, %c0_i32_22 : i32
    scf.if %56 {
      %c0_23 = arith.constant 0 : index
      %c0_24 = arith.constant 0 : index
      %57 = vector.load %arg6[%c0_23, %c0_24] : memref<8x1xf32, #tpu.memory_space<vmem>>, vector<8x1xf32>
      %58 = vector.shape_cast %57 : vector<8x1xf32> to vector<1x8x1xf32>
      %cst_25 = arith.constant dense<0.000000e+00> : vector<1xf32>
      %59 = vector.multi_reduction <add>, %58, %cst_25 [1, 2] : vector<1x8x1xf32> to vector<1xf32>
      %60 = vector.shape_cast %59 : vector<1xf32> to vector<1x1x1xf32>
      %61 = vector.extract %60[0, 0, 0] : f32 from vector<1x1x1xf32>
      %62 = vector.broadcast %61 : f32 to vector<8x128xf32>
      %c0_26 = arith.constant 0 : index
      %c0_27 = arith.constant 0 : index
      %63 = vector.load %arg5[%c0_26, %c0_27] : memref<8x128xf32, #tpu.memory_space<vmem>>, vector<8x128xf32>
      tpu.vector_store %arg5[%c0_26, %c0_27], %62 {strides = array<i32>} : memref<8x128xf32, #tpu.memory_space<vmem>>, vector<8x128xf32>,
    } else {
    }
    return
  }
  func.func @transform_0(%arg0: i32, %arg1: i32) -> (i32, i32) {
    %c1_i32 = arith.constant 1 : i32
    %0 = arith.muli %arg0, %c1_i32 : i32
    %1 = arith.addi %0, %arg1 : i32
    %c0_i32 = arith.constant 0 : i32
    %c0_i32_0 = arith.constant 0 : i32
    return %1, %c0_i32 : i32, i32
  }
  func.func @transform_1(%arg0: i32, %arg1: i32) -> (i32, i32) {
    %c1_i32 = arith.constant 1 : i32
    %0 = arith.muli %arg0, %c1_i32 : i32
    %1 = arith.addi %0, %arg1 : i32
    %c0_i32 = arith.constant 0 : i32
    %c0_i32_0 = arith.constant 0 : i32
    return %1, %c0_i32 : i32, i32
  }
  func.func @transform_2(%arg0: i32, %arg1: i32) -> (i32, i32) {
    %c1_i32 = arith.constant 1 : i32
    %0 = arith.muli %arg0, %c1_i32 : i32
    %1 = arith.addi %0, %arg1 : i32
    %c0_i32 = arith.constant 0 : i32
    %c0_i32_0 = arith.constant 0 : i32
    return %1, %c0_i32 : i32, i32
  }
  func.func @transform_3(%arg0: i32, %arg1: i32) -> (i32, i32) {
    %c0_i32 = arith.constant 0 : i32
    %c0_i32_0 = arith.constant 0 : i32
    return %arg0, %c0_i32 : i32, i32
  }
}

</mosaic_0001>

<llo_original>
// kernel: tpu_custom_call.1
$region0: #{tpu_custom_call.1}
  #allocation0 [shape = 'u32[]', space=smem, size = 0x4, offset = 0x4, fixed_abs, tag = 'smem constant byte address 0x4 - core index']
  #allocation1 [shape = 'u32[144,128]{1,0:T(1,128)}', space=vmem, size = 0x12000, scoped, tag = 'internal scratch']
  #allocation2 [shape = 'f32[8,1]{1,0:T(8,128)}', space=vmem, size = 0x1000, scoped, tag = 'scratch operand']
  %s0 = inlined_call_operand.vmem [shape: f32[8,32], index: 0, kind: input, shape index: {}]
  %s1 = inlined_call_operand.hbm [shape: f32[8,32], index: 1, kind: input, shape index: {}]
  %s2 = inlined_call_operand.vmem [shape: s32[8,1], index: 2, kind: input, shape index: {}]
  %s3 = inlined_call_operand.hbm [shape: f32[8,128], index: 3, kind: output, shape index: {}]
  %s4 = sld [smem:[#allocation0]]
  $region34: #{tpu_custom_call.1} parent=0
    _
  %s6 = ssub.s32 1, %s4
  %s7 = scalar_select 0, %s6, %s4
  $region1: #{tpu_custom_call.1} parent=0
    #allocation3 [shape = 'u8[4096]{0}', space=vmem, size = 0x1000, scoped, tag = 'input window, operand 1, single buffered']
    #allocation4 [shape = 's32[1]{0}', space=sflag, size = 0x4, scoped, tag = 'scoped memory for tpu_custom_call.1']
    #allocation5 [shape = 's32[1]{0}', space=sflag, size = 0x4, scoped, tag = 'scoped memory for tpu_custom_call.1']
    #allocation6 [shape = 'u8[4096]{0}', space=vmem, size = 0x1000, scoped, tag = 'output window, operand 0, single buffered']
    %8 = vsyncpa [#allocation4], 0
    %9 = vsyncpa [#allocation5], 0
    // Predicated region
    $region2: #{tpu_custom_call.1} parent=1 // pred_check
      _
    $region3: #{tpu_custom_call.1} parent=1 // pred_check_branch
      %11 = sbr.rel (0) target = $region5
    $region4: #{tpu_custom_call.1} parent=1 // pred_region
      %s12 = sadd.s32 0, 0
      %p13 = scmp.lt.s32.totalorder %s12, 0
      %s14 = scalar_select %p13, %s12, 0
      %s15 = smul.addr %s14, 8
      %s16 = scalar_lea.vmem %s0, %s15
      %s17 = sadd.s32 0, 0
    $region5: #{tpu_custom_call.1} parent=1 // pred_fallthru
      _
    // Predicated region
    $region6: #{tpu_custom_call.1} parent=1 // pred_check
      _
    $region7: #{tpu_custom_call.1} parent=1 // pred_check_branch
      %19 = sbr.rel (0) target = $region9
    $region8: #{tpu_custom_call.1} parent=1 // pred_region
      %s20 = sadd.s32 0, 0
      %s22 = ssub.s32 128, 128
      %23 = vsyncadd [#allocation4], %s22
      %s24 = smul.addr %s20, 128
      %s25 = scalar_lea.hbm %s1, %s24
      %s27 = sshll.u32 [#allocation3], 4
      %s28 = int_to_ptr.vmem [resolvable:$true] %s27
      %30 = dma.hbm_to_vmem [thread:$0]  %s25, 128, %s28, [#allocation4]
    $region9: #{tpu_custom_call.1} parent=1 // pred_fallthru
      _
    // Predicated region
    $region10: #{tpu_custom_call.1} parent=1 // pred_check
      _
    $region11: #{tpu_custom_call.1} parent=1 // pred_check_branch
      %32 = sbr.rel (0) target = $region13
    $region12: #{tpu_custom_call.1} parent=1 // pred_region
      %s33 = sadd.s32 0, 0
      %p34 = scmp.lt.s32.totalorder %s33, 0
      %s35 = scalar_select %p34, %s33, 0
      %s36 = smul.addr %s35, 8
      %s37 = scalar_lea.vmem %s2, %s36
      %s38 = sadd.s32 0, 0
    $region13: #{tpu_custom_call.1} parent=1 // pred_fallthru
      _
    // Predicated region
    $region14: #{tpu_custom_call.1} parent=1 // pred_check
      _
    $region15: #{tpu_custom_call.1} parent=1 // pred_check_branch
      %40 = sbr.rel (0) target = $region17
    $region16: #{tpu_custom_call.1} parent=1 // pred_region
      %41 = dma.done [#allocation4], 128
    $region17: #{tpu_custom_call.1} parent=1 // pred_fallthru
      _
    %s42 = sadd.s32 0, 0
    %p43 = scmp.lt.s32.totalorder %s42, 0
    %s44 = scalar_select %p43, %s42, 0
    %s45 = smul.addr %s44, 8
    %s46 = scalar_lea.vmem %s0, %s45
    %s47 = sadd.s32 0, 0
    %p48 = scmp.lt.s32.totalorder %s47, 0
    %s49 = scalar_select %p48, %s47, 0
    %s50 = smul.addr %s49, 8
    %s51 = scalar_lea.vmem %s2, %s50
    %s52 = sadd.s32 0, 0
    %p53 = scmp.lt.s32.totalorder %s52, 0
    %s54 = scalar_select %p53, %s52, 0
    %s55 = smul.addr %s54, 8
    %s56 = scalar_lea.vmem %s0, %s55
    %s57 = sadd.s32 0, 0
    %s58 = sadd.s32 0, 0
    %s59 = sadd.s32 0, 0
    %p60 = scmp.lt.s32.totalorder %s59, 0
    %s61 = scalar_select %p60, %s59, 0
    %s62 = smul.addr %s61, 8
    %s63 = scalar_lea.vmem %s2, %s62
    %s64 = sadd.s32 0, 0
    %p65 = scmp.eq.s32.totalorder 0, 0
    // Predicated region
    $region18: #{tpu_custom_call.1} parent=1 // pred_check
      %p66 = pneg %p65
    $region19: #{tpu_custom_call.1} parent=1 // pred_check_branch
      %68 = sbr.rel (%p66) target = $region21
    $region20: #{tpu_custom_call.1} parent=1 // pred_region
      %vm69 = vcmask 7168
      %70 = vst.msk [vmem:[#allocation2] sm:$0xff] %vm69, 0.0
    $region21: #{tpu_custom_call.1} parent=1 // pred_fallthru
      _
    %v71 = vld [vmem:[%s56] sm:$0xff]
    %vm72 = vcmask 261120
    %v73 = vsel %vm72, %v71, -inf
    %74 = vmax.xlane.f32.xlu0 %v73
    %v75 = vpop.xlane.xlu0 %74
    %v76 = vsub.f32 %v71, %v75
    %v77 = vmul.f32 %v76, 1.442695
    %v78 = vpow.pop %v77
    %v79 = vsel %vm72, %v78, 0.0
    %80 = vadd.xlane.f32.xlu0 %v79
    %v81 = vpop.xlane.xlu0 %80
    %v82 = vlog2.pop %v81
    %v83 = vmul.f32 %v82, 0.6931472
    %v84 = vld [vmem:[%s63] sm:$0xff]
    %v85 = vlaneseq
    %v86 = vand.u32 %v85, 127
    %87 = vset.pattern.permute.xlu0 0
    %88 = vperm.xlu0 %87, %v84
    %v89 = vpop.permute.xlu0 %88
    %vm90 = vcmp.eq.s32.totalorder %v86, %v89
    %v91 = vsel %vm90, %v76, 0.0
    %v92 = vsel %vm72, %v91, 0.0
    %93 = vadd.xlane.f32.xlu0 %v92
    %v94 = vpop.xlane.xlu0 %93
    %v95 = vsub.f32 %v83, %v94
    %v96 = vmul.f32 %v95, 0.3
    %v97 = vld [vmem:[#allocation3] sm:$0xff]
    %v98 = vmul.f32 %v76, 0.5
    %v99 = vmul.f32 %v98, 1.442695
    %v100 = vpow.pop %v99
    %v101 = vsel %vm72, %v100, 0.0
    %102 = vadd.xlane.f32.xlu0 %v101
    %v103 = vpop.xlane.xlu0 %102
    %v104 = vlog2.pop %v103
    %v105 = vmul.f32 %v104, 0.6931472
    %v106 = vmul.f32 %v97, 0.5
    %v107 = vsel %vm72, %v106, -inf
    %108 = vmax.xlane.f32.xlu0 %v107
    %v109 = vpop.xlane.xlu0 %108
    %v110 = vsub.f32 %v106, %v109
    %v111 = vmul.f32 %v110, 1.442695
    %v112 = vpow.pop %v111
    %v113 = vsel %vm72, %v112, 0.0
    %114 = vadd.xlane.f32.xlu0 %v113
    %v115 = vpop.xlane.xlu0 %114
    %v116 = vsub.f32 %v110, %v98
    %v117 = vmul.f32 %v112, %v116
    %v118 = vsel %vm72, %v117, 0.0
    %119 = vadd.xlane.f32.xlu0 %v118
    %v120 = vpop.xlane.xlu0 %119
    %v121 = vrcp.pop %v115
    %v122 = vmul.f32 %v120, %v121
    %v123 = vlog2.pop %v115
    %v124 = vmul.f32 %v123, 0.6931472
    %v125 = vsub.f32 %v122, %v124
    %v126 = vadd.f32 %v125, %v105
    %v127 = vmul.f32 %v126, 2.8
    %v128 = vadd.f32 %v96, %v127
    %v129 = vld [vmem:[#allocation2] sm:$0xff]
    %v130 = vadd.f32 %v129, %v128
    %vm131 = vcmask 7168
    %132 = vst.msk [vmem:[#allocation2] sm:$0xff] %vm131, %v130
    // Predicated region
    $region22: #{tpu_custom_call.1} parent=1 // pred_check
      %p133 = pneg %p65
    $region23: #{tpu_custom_call.1} parent=1 // pred_check_branch
      %135 = sbr.rel (%p133) target = $region25
    $region24: #{tpu_custom_call.1} parent=1 // pred_region
      %v136 = vld [vmem:[#allocation2] sm:$0xff]
      %v137 = vsel %vm131, %v136, 0.0
      %138 = vadd.xlane.f32.xlu0 %v137
      %v139 = vpop.xlane.xlu0 %138
      %v140 = vrot.slane %v139, 4
      %v141 = vadd.f32 %v139, %v140
      %v142 = vrot.slane %v141, 2
      %v143 = vadd.f32 %v141, %v142
      %v144 = vrot.slane %v143, 1
      %v145 = vadd.f32 %v143, %v144
      %s146 = vtos %v145
      %v147 = vstv %s146
      %148 = vst [vmem:[#allocation6] sm:$0xff] %v147
    $region25: #{tpu_custom_call.1} parent=1 // pred_fallthru
      _
    // Predicated region
    $region26: #{tpu_custom_call.1} parent=1 // pred_check
      _
    $region27: #{tpu_custom_call.1} parent=1 // pred_check_branch
      %150 = sbr.rel (0) target = $region29
    $region28: #{tpu_custom_call.1} parent=1 // pred_region
      %s152 = ssub.s32 128, 128
      %153 = vsyncadd [#allocation5], %s152
      %s155 = sshll.u32 [#allocation6], 4
      %s156 = int_to_ptr.vmem [resolvable:$true] %s155
      %158 = dma.vmem_to_hbm [thread:$0]  %s156, 128, %s3, [#allocation5]
    $region29: #{tpu_custom_call.1} parent=1 // pred_fallthru
      _
    // Predicated region
    $region30: #{tpu_custom_call.1} parent=1 // pred_check
      _
    $region31: #{tpu_custom_call.1} parent=1 // pred_check_branch
      %160 = sbr.rel (0) target = $region33
    $region32: #{tpu_custom_call.1} parent=1 // pred_region
      %161 = dma.done [#allocation5], 128
    $region33: #{tpu_custom_call.1} parent=1 // pred_fallthru
      _
    %162 = vsyncpa [#allocation4], 1
    %163 = vsyncpa [#allocation5], 1

</llo_original>
